<compile_context>
chip_gen: v6e
topology: v6e:2x2x1
jax: 0.10.0
libtpu: 0.0.40
codegen_flags: <defaults>
</compile_context>

<pallas_src>
import numpy as np
import jax
import jax.numpy as jnp
from jax.experimental import pallas as pl
from jax.experimental.pallas import tpu as pltpu

# ---------------- configuration (small, consistent with the module) ----------
HIDDEN = 32          # config.hidden_size
HEADS = 4            # config.num_attention_heads
HEAD_DIM = HIDDEN // HEADS
INTER = 64           # config.intermediate_size
SEQ = 16             # power of two so padding_tensor_length == seq_len
BATCH = 2
LN_EPS = 1e-12       # BERT LayerNorm eps
LANES = 128

# Parameter-slab row layout (every block start is a multiple of 8 sublanes).
R_WQK = 0                                  # (160, 64) fused block-diag Q/K weight
R_WAO = R_WQK + (HEADS + 1) * HIDDEN       # 160: (32, 32) attention output dense
R_WI = R_WAO + HIDDEN                      # 192: (32, 64) intermediate dense
R_WO = R_WI + HIDDEN                       # 224: (64, 32) output dense
R_VEC = R_WO + INTER                       # 288: 8 rows of biases / LN params
ROWS = R_VEC + 8                           # 296


# ---------------- flip-index construction (deterministic branch) -------------
def make_flip_idx(seq_len, num_heads):
    """Reproduces FlipSelfAttention.length_flip_index_dict for power-of-two
    seq_len and num_heads <= ceil(log2(seq_len)) (the deterministic branch)."""
    pad_len = int(2 ** np.ceil(np.log2(seq_len)))
    assert pad_len == seq_len, "kernel assumes power-of-two seq_len"
    logp = int(np.ceil(np.log2(seq_len)))
    assert num_heads <= logp, "deterministic (bias-free) branch of reference"
    base = np.arange(pad_len)
    rows = []
    for i in range(num_heads):
        pp = int(2 ** (logp - 1 - i))
        temp = base.reshape(pp, pad_len // pp)
        rows.append(np.flip(temp % pad_len, axis=-1).flatten())
    return np.stack(rows).astype(np.int32)                 # (HEADS, S)


def make_row_gather_idx(flip_idx, batch, seq):
    """Flat row-gather table: for each (b, s) emit [identity, flip_0..flip_{H-1}].
    Built once at init; one jnp.take with this table + a contiguous reshape
    produces the [x | flipped-x per head] activation slab."""
    ident = np.arange(batch * seq, dtype=np.int32).reshape(batch, seq, 1)
    flips = (np.arange(batch, dtype=np.int32)[:, None, None] * seq
             + flip_idx.astype(np.int32)[None, :, :])          # (B, HEADS, S)
    flips = np.transpose(flips, (0, 2, 1))                     # (B, S, HEADS)
    return np.concatenate([ident, flips], axis=-1).reshape(-1)  # (B*S*(HEADS+1),)


# ---------------- one-time parameter packing (init path, not per call) -------
def pack_params(params):
    """Single (ROWS, 128) f32 slab: fused Q/K weight, the three dense weights,
    and all eight bias / LayerNorm rows."""
    wq = np.asarray(params["wq"], np.float32)
    wk = np.asarray(params["wk"], np.float32)
    p = np.zeros((ROWS, LANES), np.float32)

    # Fused block-diagonal Q/K weight: [x | xf_h] input blocks -> [q | k_flip] cols.
    p[R_WQK:R_WQK + HIDDEN, 0:HIDDEN] = wq
    for h in range(HEADS):
        rows = slice(R_WQK + (h + 1) * HIDDEN, R_WQK + (h + 2) * HIDDEN)
        cols = slice(HIDDEN + h * HEAD_DIM, HIDDEN + (h + 1) * HEAD_DIM)
        p[rows, cols] = wk[:, h * HEAD_DIM:(h + 1) * HEAD_DIM]

    p[R_WAO:R_WI, 0:HIDDEN] = np.asarray(params["wao"], np.float32)
    p[R_WI:R_WO, 0:INTER] = np.asarray(params["wi"], np.float32)
    p[R_WO:R_VEC, 0:HIDDEN] = np.asarray(params["wo"], np.float32)

    p[R_VEC + 0, 0:HIDDEN] = np.asarray(params["bq"], np.float32)[0]
    p[R_VEC + 0, HIDDEN:2 * HIDDEN] = np.asarray(params["bk"], np.float32)[0]
    p[R_VEC + 1, 0:HIDDEN] = np.asarray(params["bao"], np.float32)[0]
    p[R_VEC + 2, 0:HIDDEN] = np.asarray(params["g1"], np.float32)[0]
    p[R_VEC + 3, 0:HIDDEN] = np.asarray(params["b1"], np.float32)[0]
    p[R_VEC + 4, 0:INTER] = np.asarray(params["bi"], np.float32)[0]
    p[R_VEC + 5, 0:HIDDEN] = np.asarray(params["bo"], np.float32)[0]
    p[R_VEC + 6, 0:HIDDEN] = np.asarray(params["g2"], np.float32)[0]
    p[R_VEC + 7, 0:HIDDEN] = np.asarray(params["b2"], np.float32)[0]
    return jnp.asarray(p)


# ---------------- in-kernel helpers -------------------------------------------
def _layernorm(v, g, b):
    mu = jnp.mean(v, axis=-1, keepdims=True)
    var = jnp.mean(jnp.square(v - mu), axis=-1, keepdims=True)
    return (v - mu) * jax.lax.rsqrt(var + LN_EPS) * g + b


def _gelu(x):
    # TODO(synk): HF BERT "gelu" is erf-exact; tanh approximation used here for
    # guaranteed EUP lowering (the in-script reference uses the same formula,
    # so the self-check is consistent).
    return 0.5 * x * (1.0 + jnp.tanh(0.7978845608028654 * (x + 0.044715 * x * x * x)))


# ---------------- Pallas kernel ------------------------------------------------
def flipformer_kernel(lhs_ref, p_ref, out_ref):
    lhs = lhs_ref[...]                                   # (BS, 160) = [x | xf_h0..h3]
    x = lhs[:, :HIDDEN]                                  # residual input, lane block 0

    vec = p_ref[R_VEC:R_VEC + 8, :]                      # (8, 128) bias / LN block
    bqk = vec[0:1, :2 * HIDDEN]                          # [bq | bk]
    bao = vec[1:2, :HIDDEN]
    g1, b1 = vec[2:3, :HIDDEN], vec[3:4, :HIDDEN]
    bi = vec[4:5, :INTER]
    bo = vec[5:6, :HIDDEN]
    g2, b2 = vec[6:7, :HIDDEN], vec[7:8, :HIDDEN]

    # FlipSelfAttention: fused Q / flipped-K projection, single MXU op (K=160, N=64).
    #   qk[:, :H]  = x @ Wq + bq
    #   qk[:, H:]  = per-head (P_h x) @ Wk_h + bk  (block-diagonal weight)
    wqk = p_ref[R_WQK:R_WAO, :2 * HIDDEN]                # (160, 64)
    qk = jnp.dot(lhs, wqk, preferred_element_type=jnp.float32) + bqk
    ctx = qk[:, :HIDDEN] * qk[:, HIDDEN:2 * HIDDEN]      # q * k_flip  (BS, H)

    # BertSelfOutput: dense + residual + LayerNorm
    attn = jnp.dot(ctx, p_ref[R_WAO:R_WI, :HIDDEN],
                   preferred_element_type=jnp.float32) + bao
    attn_out = _layernorm(attn + x, g1, b1)

    # BertIntermediate: dense + GELU
    inter = jnp.dot(attn_out, p_ref[R_WI:R_WO, :INTER],
                    preferred_element_type=jnp.float32) + bi
    inter = _gelu(inter)

    # BertOutput: dense + residual + LayerNorm
    out = jnp.dot(inter, p_ref[R_WO:R_VEC, :HIDDEN],
                  preferred_element_type=jnp.float32) + bo
    out_ref[...] = _layernorm(out + attn_out, g2, b2)


# ---------------- wrapper -------------------------------------------------------
def flipformer_layer(hidden_states, attention_mask, packed_params, gather_idx):
    # attention_mask is accepted for API fidelity but (as in the reference
    # FlipSelfAttention.forward) never used.
    del attention_mask
    B, S, H = hidden_states.shape
    BS = B * S

    # Per-call plumbing: ONE row gather + contiguous reshape builds the
    # [x | flipped-x per head] lane-dense activation slab (32, 160).
    x2d = hidden_states.reshape(BS, H)
    lhs = jnp.take(x2d, gather_idx, axis=0).reshape(BS, (HEADS + 1) * H)

    full = lambda a: pl.BlockSpec(a.shape, lambda i: (0,) * a.ndim)

    cost = pl.CostEstimate(
        flops=2 * BS * ((HEADS + 1) * H * 2 * H + H * H + H * INTER + INTER * H),
        transcendentals=BS * INTER + 2 * BS,
        bytes_accessed=4 * (lhs.size + packed_params.size + BS * H),
    )

    out2d = pl.pallas_call(
        flipformer_kernel,
        out_shape=jax.ShapeDtypeStruct((BS, H), jnp.float32),
        grid_spec=pl.GridSpec(
            # Toy size: one step. At real BERT sizes, split BS into row tiles on a
            # leading 'parallel' axis so v7x shards across its 2 TensorCores.
            grid=(1,),
            in_specs=[full(lhs), full(packed_params)],
            out_specs=pl.BlockSpec((BS, H), lambda i: (0, 0)),
        ),
        compiler_params=pltpu.CompilerParams(
            dimension_semantics=("arbitrary",)),
        cost_estimate=cost,
    )(lhs, packed_params)

    return out2d.reshape(B, S, H)


# ---------------- pure-JAX reference (same math, for verification) -------------
def flipformer_reference(x, params, flip_idx):
    B, S, H = x.shape
    q = x @ params["wq"] + params["bq"]
    k = x @ params["wk"] + params["bk"]
    qh = q.reshape(B, S, HEADS, HEAD_DIM).transpose(0, 2, 1, 3)     # (B,Hh,S,D)
    kh = k.reshape(B, S, HEADS, HEAD_DIM).transpose(0, 2, 1, 3)
    fliper = jnp.stack([kh[:, h][:, flip_idx[h], :] for h in range(HEADS)], axis=1)
    ctx = (qh * fliper).transpose(0, 2, 1, 3).reshape(B, S, H)

    def ln(v, g, b):
        mu = jnp.mean(v, -1, keepdims=True)
        var = jnp.mean(jnp.square(v - mu), -1, keepdims=True)
        return (v - mu) * jax.lax.rsqrt(var + LN_EPS) * g + b

    attn = ctx @ params["wao"] + params["bao"]
    attn_out = ln(attn + x, params["g1"], params["b1"])
    inter = attn_out @ params["wi"] + params["bi"]
    inter = 0.5 * inter * (1.0 + jnp.tanh(0.7978845608028654 *
                                          (inter + 0.044715 * inter ** 3)))
    out = inter @ params["wo"] + params["bo"]
    return ln(out + attn_out, params["g2"], params["b2"])


# ---------------- deterministic parameter init ---------------------------------
def init_params(key):
    ks = jax.random.split(key, 8)
    s_h = 1.0 / np.sqrt(HIDDEN)
    s_i = 1.0 / np.sqrt(INTER)
    p = {
        # nn.Linear weights stored pre-transposed: (in, out), so y = x @ W + b
        "wq": jax.random.uniform(ks[0], (HIDDEN, HIDDEN), jnp.float32, -s_h, s_h),
        "bq": jax.random.uniform(ks[1], (1, HIDDEN), jnp.float32, -s_h, s_h),
        "wk": jax.random.uniform(ks[2], (HIDDEN, HIDDEN), jnp.float32, -s_h, s_h),
        "bk": jax.random.uniform(ks[3], (1, HIDDEN), jnp.float32, -s_h, s_h),
        "wao": jax.random.uniform(ks[4], (HIDDEN, HIDDEN), jnp.float32, -s_h, s_h),
        "bao": jax.random.uniform(ks[5], (1, HIDDEN), jnp.float32, -s_h, s_h),
        "g1": jnp.ones((1, HIDDEN), jnp.float32),
        "b1": jnp.zeros((1, HIDDEN), jnp.float32),
        "wi": jax.random.uniform(ks[6], (HIDDEN, INTER), jnp.float32, -s_h, s_h),
        "bi": jax.random.uniform(ks[7], (1, INTER), jnp.float32, -s_h, s_h),
        "wo": jax.random.uniform(jax.random.PRNGKey(42), (INTER, HIDDEN),
                                 jnp.float32, -s_i, s_i),
        "bo": jax.random.uniform(jax.random.PRNGKey(43), (1, HIDDEN),
                                 jnp.float32, -s_i, s_i),
        "g2": jnp.ones((1, HIDDEN), jnp.float32),
        "b2": jnp.zeros((1, HIDDEN), jnp.float32),
    }
    return p


if __name__ == "__main__":
    key = jax.random.PRNGKey(0)
    k_x, k_p = jax.random.split(key)
    x = jax.random.normal(k_x, (BATCH, SEQ, HIDDEN), jnp.float32)
    attention_mask = jnp.zeros((BATCH, 1, 1, SEQ), jnp.float32)     # unused, API parity
    params = init_params(k_p)

    # --- init-path preparation (hoisted out of the per-call path) -------------
    flip_idx = make_flip_idx(SEQ, HEADS)                            # (HEADS, S)
    packed_params = pack_params(params)                             # (296, 128) slab
    gather_idx = jnp.asarray(make_row_gather_idx(flip_idx, BATCH, SEQ))

    out = flipformer_layer(x, attention_mask, packed_params, gather_idx)
    out = jax.block_until_ready(out)

    ref = flipformer_reference(x, params, flip_idx)
    np.testing.assert_allclose(np.asarray(out), np.asarray(ref),
                               rtol=1e-5, atol=1e-5)
    print("KERNEL_OK")
</pallas_src>

<mosaic_0001>
module attributes {stable_mosaic.version = 11 : i64} {
  func.func @flipformer_kernel(%arg0: i32, %arg1: memref<32x160xf32, #tpu.memory_space<vmem>>, %arg2: memref<296x128xf32, #tpu.memory_space<vmem>>, %arg3: memref<32x32xf32, #tpu.memory_space<vmem>>) attributes {dimension_semantics = [#tpu.dimension_semantics<arbitrary>], iteration_bounds = array<i64: 1>, scalar_prefetch = 0 : i64, scratch_operands = 0 : i64, tpu.core_type = #tpu.core_type<tc>, window_params = [{pipeline_mode = #tpu.pipeline_mode<synchronous>, transform_indices = @transform_0, window_bounds = array<i64: 32, 160>}, {pipeline_mode = #tpu.pipeline_mode<synchronous>, transform_indices = @transform_1, window_bounds = array<i64: 296, 128>}, {pipeline_mode = #tpu.pipeline_mode<synchronous>, transform_indices = @transform_2, window_bounds = array<i64: 32, 32>}]} {
    %c0 = arith.constant 0 : index
    %c0_0 = arith.constant 0 : index
    %0 = vector.load %arg1[%c0, %c0_0] : memref<32x160xf32, #tpu.memory_space<vmem>>, vector<32x160xf32>
    %1 = vector.extract_strided_slice %0 {offsets = [0, 0], sizes = [32, 32], strides = [1, 1]} : vector<32x160xf32> to vector<32x32xf32>
    %c288 = arith.constant 288 : index
    %c0_1 = arith.constant 0 : index
    %2 = vector.load %arg2[%c288, %c0_1] : memref<296x128xf32, #tpu.memory_space<vmem>>, vector<8x128xf32>
    %3 = vector.extract_strided_slice %2 {offsets = [0, 0], sizes = [1, 64], strides = [1, 1]} : vector<8x128xf32> to vector<1x64xf32>
    %4 = vector.extract_strided_slice %2 {offsets = [1, 0], sizes = [1, 32], strides = [1, 1]} : vector<8x128xf32> to vector<1x32xf32>
    %5 = vector.extract_strided_slice %2 {offsets = [2, 0], sizes = [1, 32], strides = [1, 1]} : vector<8x128xf32> to vector<1x32xf32>
    %6 = vector.extract_strided_slice %2 {offsets = [3, 0], sizes = [1, 32], strides = [1, 1]} : vector<8x128xf32> to vector<1x32xf32>
    %7 = vector.extract_strided_slice %2 {offsets = [4, 0], sizes = [1, 64], strides = [1, 1]} : vector<8x128xf32> to vector<1x64xf32>
    %8 = vector.extract_strided_slice %2 {offsets = [5, 0], sizes = [1, 32], strides = [1, 1]} : vector<8x128xf32> to vector<1x32xf32>
    %9 = vector.extract_strided_slice %2 {offsets = [6, 0], sizes = [1, 32], strides = [1, 1]} : vector<8x128xf32> to vector<1x32xf32>
    %10 = vector.extract_strided_slice %2 {offsets = [7, 0], sizes = [1, 32], strides = [1, 1]} : vector<8x128xf32> to vector<1x32xf32>
    %c0_2 = arith.constant 0 : index
    %c0_3 = arith.constant 0 : index
    %11 = vector.load %arg2[%c0_2, %c0_3] : memref<296x128xf32, #tpu.memory_space<vmem>>, vector<160x64xf32>
    %cst = arith.constant dense<0.000000e+00> : vector<32x64xf32>
    %12 = tpu.matmul %0, %11, %cst {dimension_numbers = #tpu.dot_dimension_numbers<[1], [0], [0], [1], [0, 0, 1, 1], [], []>} : vector<32x160xf32>, vector<160x64xf32>, vector<32x64xf32> -> vector<32x64xf32>
    %13 = vector.broadcast %3 : vector<1x64xf32> to vector<32x64xf32>
    %14 = arith.addf %12, %13 : vector<32x64xf32>
    %15 = vector.extract_strided_slice %14 {offsets = [0, 0], sizes = [32, 32], strides = [1, 1]} : vector<32x64xf32> to vector<32x32xf32>
    %16 = vector.extract_strided_slice %14 {offsets = [0, 32], sizes = [32, 32], strides = [1, 1]} : vector<32x64xf32> to vector<32x32xf32>
    %17 = arith.mulf %15, %16 : vector<32x32xf32>
    %c160 = arith.constant 160 : index
    %c0_4 = arith.constant 0 : index
    %18 = vector.load %arg2[%c160, %c0_4] : memref<296x128xf32, #tpu.memory_space<vmem>>, vector<32x32xf32>
    %cst_5 = arith.constant dense<0.000000e+00> : vector<32x32xf32>
    %19 = tpu.matmul %17, %18, %cst_5 {dimension_numbers = #tpu.dot_dimension_numbers<[1], [0], [0], [1], [0, 0, 1, 1], [], []>} : vector<32x32xf32>, vector<32x32xf32>, vector<32x32xf32> -> vector<32x32xf32>
    %20 = vector.broadcast %4 : vector<1x32xf32> to vector<32x32xf32>
    %21 = arith.addf %19, %20 : vector<32x32xf32>
    %22 = arith.addf %21, %1 : vector<32x32xf32>
    %cst_6 = arith.constant dense<0.000000e+00> : vector<32xf32>
    %23 = vector.multi_reduction <add>, %22, %cst_6 [1] : vector<32x32xf32> to vector<32xf32>
    %24 = vector.shape_cast %23 : vector<32xf32> to vector<32x1xf32>
    %cst_7 = arith.constant 3.200000e+01 : f32
    %25 = vector.broadcast %cst_7 : f32 to vector<32x1xf32>
    %26 = arith.divf %24, %25 : vector<32x1xf32>
    %27 = vector.broadcast %26 : vector<32x1xf32> to vector<32x32xf32>
    %28 = arith.subf %22, %27 : vector<32x32xf32>
    %29 = arith.mulf %28, %28 : vector<32x32xf32>
    %cst_8 = arith.constant dense<0.000000e+00> : vector<32xf32>
    %30 = vector.multi_reduction <add>, %29, %cst_8 [1] : vector<32x32xf32> to vector<32xf32>
    %31 = vector.shape_cast %30 : vector<32xf32> to vector<32x1xf32>
    %cst_9 = arith.constant 3.200000e+01 : f32
    %32 = vector.broadcast %cst_9 : f32 to vector<32x1xf32>
    %33 = arith.divf %31, %32 : vector<32x1xf32>
    %34 = vector.broadcast %26 : vector<32x1xf32> to vector<32x32xf32>
    %35 = arith.subf %22, %34 : vector<32x32xf32>
    %cst_10 = arith.constant 9.99999996E-13 : f32
    %36 = vector.broadcast %cst_10 : f32 to vector<32x1xf32>
    %37 = arith.addf %33, %36 : vector<32x1xf32>
    %38 = math.rsqrt %37 : vector<32x1xf32>
    %39 = vector.broadcast %38 : vector<32x1xf32> to vector<32x32xf32>
    %40 = arith.mulf %35, %39 : vector<32x32xf32>
    %41 = vector.broadcast %5 : vector<1x32xf32> to vector<32x32xf32>
    %42 = arith.mulf %40, %41 : vector<32x32xf32>
    %43 = vector.broadcast %6 : vector<1x32xf32> to vector<32x32xf32>
    %44 = arith.addf %42, %43 : vector<32x32xf32>
    %c192 = arith.constant 192 : index
    %c0_11 = arith.constant 0 : index
    %45 = vector.load %arg2[%c192, %c0_11] : memref<296x128xf32, #tpu.memory_space<vmem>>, vector<32x64xf32>
    %cst_12 = arith.constant dense<0.000000e+00> : vector<32x64xf32>
    %46 = tpu.matmul %44, %45, %cst_12 {dimension_numbers = #tpu.dot_dimension_numbers<[1], [0], [0], [1], [0, 0, 1, 1], [], []>} : vector<32x32xf32>, vector<32x64xf32>, vector<32x64xf32> -> vector<32x64xf32>
    %47 = vector.broadcast %7 : vector<1x64xf32> to vector<32x64xf32>
    %48 = arith.addf %46, %47 : vector<32x64xf32>
    %cst_13 = arith.constant 5.000000e-01 : f32
    %49 = vector.broadcast %cst_13 : f32 to vector<32x64xf32>
    %50 = arith.mulf %49, %48 : vector<32x64xf32>
    %cst_14 = arith.constant 4.471500e-02 : f32
    %51 = vector.broadcast %cst_14 : f32 to vector<32x64xf32>
    %52 = arith.mulf %51, %48 : vector<32x64xf32>
    %53 = arith.mulf %52, %48 : vector<32x64xf32>
    %54 = arith.mulf %53, %48 : vector<32x64xf32>
    %55 = arith.addf %48, %54 : vector<32x64xf32>
    %cst_15 = arith.constant 0.797884583 : f32
    %56 = vector.broadcast %cst_15 : f32 to vector<32x64xf32>
    %57 = arith.mulf %56, %55 : vector<32x64xf32>
    %58 = math.tanh %57 : vector<32x64xf32>
    %cst_16 = arith.constant 1.000000e+00 : f32
    %59 = vector.broadcast %cst_16 : f32 to vector<32x64xf32>
    %60 = arith.addf %59, %58 : vector<32x64xf32>
    %61 = arith.mulf %50, %60 : vector<32x64xf32>
    %c224 = arith.constant 224 : index
    %c0_17 = arith.constant 0 : index
    %62 = vector.load %arg2[%c224, %c0_17] : memref<296x128xf32, #tpu.memory_space<vmem>>, vector<64x32xf32>
    %cst_18 = arith.constant dense<0.000000e+00> : vector<32x32xf32>
    %63 = tpu.matmul %61, %62, %cst_18 {dimension_numbers = #tpu.dot_dimension_numbers<[1], [0], [0], [1], [0, 0, 1, 1], [], []>} : vector<32x64xf32>, vector<64x32xf32>, vector<32x32xf32> -> vector<32x32xf32>
    %64 = vector.broadcast %8 : vector<1x32xf32> to vector<32x32xf32>
    %65 = arith.addf %63, %64 : vector<32x32xf32>
    %66 = arith.addf %65, %44 : vector<32x32xf32>
    %cst_19 = arith.constant dense<0.000000e+00> : vector<32xf32>
    %67 = vector.multi_reduction <add>, %66, %cst_19 [1] : vector<32x32xf32> to vector<32xf32>
    %68 = vector.shape_cast %67 : vector<32xf32> to vector<32x1xf32>
    %cst_20 = arith.constant 3.200000e+01 : f32
    %69 = vector.broadcast %cst_20 : f32 to vector<32x1xf32>
    %70 = arith.divf %68, %69 : vector<32x1xf32>
    %71 = vector.broadcast %70 : vector<32x1xf32> to vector<32x32xf32>
    %72 = arith.subf %66, %71 : vector<32x32xf32>
    %73 = arith.mulf %72, %72 : vector<32x32xf32>
    %cst_21 = arith.constant dense<0.000000e+00> : vector<32xf32>
    %74 = vector.multi_reduction <add>, %73, %cst_21 [1] : vector<32x32xf32> to vector<32xf32>
    %75 = vector.shape_cast %74 : vector<32xf32> to vector<32x1xf32>
    %cst_22 = arith.constant 3.200000e+01 : f32
    %76 = vector.broadcast %cst_22 : f32 to vector<32x1xf32>
    %77 = arith.divf %75, %76 : vector<32x1xf32>
    %78 = vector.broadcast %70 : vector<32x1xf32> to vector<32x32xf32>
    %79 = arith.subf %66, %78 : vector<32x32xf32>
    %cst_23 = arith.constant 9.99999996E-13 : f32
    %80 = vector.broadcast %cst_23 : f32 to vector<32x1xf32>
    %81 = arith.addf %77, %80 : vector<32x1xf32>
    %82 = math.rsqrt %81 : vector<32x1xf32>
    %83 = vector.broadcast %82 : vector<32x1xf32> to vector<32x32xf32>
    %84 = arith.mulf %79, %83 : vector<32x32xf32>
    %85 = vector.broadcast %9 : vector<1x32xf32> to vector<32x32xf32>
    %86 = arith.mulf %84, %85 : vector<32x32xf32>
    %87 = vector.broadcast %10 : vector<1x32xf32> to vector<32x32xf32>
    %88 = arith.addf %86, %87 : vector<32x32xf32>
    %c0_24 = arith.constant 0 : index
    %c0_25 = arith.constant 0 : index
    %89 = vector.load %arg3[%c0_24, %c0_25] : memref<32x32xf32, #tpu.memory_space<vmem>>, vector<32x32xf32>
    tpu.vector_store %arg3[%c0_24, %c0_25], %88 {strides = array<i32>} : memref<32x32xf32, #tpu.memory_space<vmem>>, vector<32x32xf32>,
    return
  }
  func.func @transform_0(%arg0: i32) -> (i32, i32) {
    %c0_i32 = arith.constant 0 : i32
    %c0_i32_0 = arith.constant 0 : i32
    %c0_i32_1 = arith.constant 0 : i32
    return %c0_i32, %c0_i32_0 : i32, i32
  }
  func.func @transform_1(%arg0: i32) -> (i32, i32) {
    %c0_i32 = arith.constant 0 : i32
    %c0_i32_0 = arith.constant 0 : i32
    %c0_i32_1 = arith.constant 0 : i32
    return %c0_i32, %c0_i32_0 : i32, i32
  }
  func.func @transform_2(%arg0: i32) -> (i32, i32) {
    %c0_i32 = arith.constant 0 : i32
    %c0_i32_0 = arith.constant 0 : i32
    %c0_i32_1 = arith.constant 0 : i32
    return %c0_i32, %c0_i32_0 : i32, i32
  }
}

</mosaic_0001>

<llo_original>
// kernel: tpu_custom_call.1
$region0: #{tpu_custom_call.1}
  #allocation0 [shape = 'u32[]', space=smem, size = 0x4, offset = 0x4, fixed_abs, tag = 'smem constant byte address 0x4 - core index']
  #allocation1 [shape = 'u32[144,128]{1,0:T(1,128)}', space=vmem, size = 0x12000, scoped, tag = 'internal scratch']
  %s0 = inlined_call_operand.hbm [shape: f32[32,160], index: 0, kind: input, shape index: {}]
  %s1 = inlined_call_operand.hbm [shape: f32[296,128], index: 1, kind: input, shape index: {}]
  %s2 = inlined_call_operand.hbm [shape: f32[32,32], index: 2, kind: output, shape index: {}]
  %s3 = sld [smem:[#allocation0]]
  $region26: #{tpu_custom_call.1} parent=0
    _
  %s5 = ssub.s32 1, %s3
  %s6 = scalar_select 0, %s5, %s3
  $region1: #{tpu_custom_call.1} parent=0
    #allocation2 [shape = 'u8[32768]{0}', space=vmem, size = 0x8000, scoped, tag = 'input window, operand 0, single buffered']
    #allocation3 [shape = 's32[1]{0}', space=sflag, size = 0x4, scoped, tag = 'scoped memory for tpu_custom_call.1']
    #allocation4 [shape = 's32[1]{0}', space=sflag, size = 0x4, scoped, tag = 'scoped memory for tpu_custom_call.1']
    #allocation5 [shape = 'u8[151552]{0}', space=vmem, size = 0x25000, scoped, tag = 'input window, operand 1, single buffered']
    #allocation6 [shape = 's32[1]{0}', space=sflag, size = 0x4, scoped, tag = 'scoped memory for tpu_custom_call.1']
    #allocation7 [shape = 'u8[16384]{0}', space=vmem, size = 0x4000, scoped, tag = 'output window, operand 0, single buffered']
    %7 = vsyncpa [#allocation3], 0
    %8 = vsyncpa [#allocation6], 0
    %9 = vsyncpa [#allocation4], 0
    // Predicated region
    $region2: #{tpu_custom_call.1} parent=1 // pred_check
      _
    $region3: #{tpu_custom_call.1} parent=1 // pred_check_branch
      %11 = sbr.rel (0) target = $region5
    $region4: #{tpu_custom_call.1} parent=1 // pred_region
      %s13 = ssub.s32 1024, 1024
      %14 = vsyncadd [#allocation3], %s13
      %s15 = sshll.u32 [#allocation2], 4
      %s16 = int_to_ptr.vmem [resolvable:$true] %s15
      %21 = dma.hbm_to_vmem [thread:$0]  %s0, 1024, %s16, [#allocation3], 256, 256, 16
    $region5: #{tpu_custom_call.1} parent=1 // pred_fallthru
      _
    // Predicated region
    $region6: #{tpu_custom_call.1} parent=1 // pred_check
      _
    $region7: #{tpu_custom_call.1} parent=1 // pred_check_branch
      %23 = sbr.rel (0) target = $region9
    $region8: #{tpu_custom_call.1} parent=1 // pred_region
      %s25 = ssub.s32 4736, 4736
      %26 = vsyncadd [#allocation6], %s25
      %s27 = sshll.u32 [#allocation5], 4
      %s28 = int_to_ptr.vmem [resolvable:$true] %s27
      %33 = dma.hbm_to_vmem [thread:$0]  %s1, 4736, %s28, [#allocation6], 128, 128, 8
    $region9: #{tpu_custom_call.1} parent=1 // pred_fallthru
      _
    // Predicated region
    $region10: #{tpu_custom_call.1} parent=1 // pred_check
      _
    $region11: #{tpu_custom_call.1} parent=1 // pred_check_branch
      %35 = sbr.rel (0) target = $region13
    $region12: #{tpu_custom_call.1} parent=1 // pred_region
      %36 = dma.done [#allocation3], 1024
    $region13: #{tpu_custom_call.1} parent=1 // pred_fallthru
      _
    // Predicated region
    $region14: #{tpu_custom_call.1} parent=1 // pred_check
      _
    $region15: #{tpu_custom_call.1} parent=1 // pred_check_branch
      %38 = sbr.rel (0) target = $region17
    $region16: #{tpu_custom_call.1} parent=1 // pred_region
      %39 = dma.done [#allocation6], 4736
    $region17: #{tpu_custom_call.1} parent=1 // pred_fallthru
      _
    %v40 = vld [vmem:[#allocation2] sm:$0xff]
    %v41 = vld [vmem:[#allocation2 + $0x8] sm:$0xff]
    %v42 = vld [vmem:[#allocation2 + $0x10] sm:$0xff]
    %v43 = vld [vmem:[#allocation2 + $0x18] sm:$0xff]
    %v44 = vld [vmem:[#allocation2 + $0x20] sm:$0xff]
    %v45 = vld [vmem:[#allocation2 + $0x28] sm:$0xff]
    %v46 = vld [vmem:[#allocation2 + $0x30] sm:$0xff]
    %v47 = vld [vmem:[#allocation2 + $0x38] sm:$0xff]
    %v48 = vld [vmem:[#allocation5 + $0x120] sm:$0xff]
    %v49 = vld [vmem:[#allocation5] sm:$0xff]
    %v50 = vld [vmem:[#allocation5 + $0x8] sm:$0xff]
    %v51 = vld [vmem:[#allocation5 + $0x10] sm:$0xff]
    %v52 = vld [vmem:[#allocation5 + $0x18] sm:$0xff]
    %v53 = vld [vmem:[#allocation5 + $0x20] sm:$0xff]
    %v54 = vld [vmem:[#allocation5 + $0x28] sm:$0xff]
    %v55 = vld [vmem:[#allocation5 + $0x30] sm:$0xff]
    %v56 = vld [vmem:[#allocation5 + $0x38] sm:$0xff]
    %v57 = vld [vmem:[#allocation5 + $0x40] sm:$0xff]
    %v58 = vld [vmem:[#allocation5 + $0x48] sm:$0xff]
    %v59 = vld [vmem:[#allocation5 + $0x50] sm:$0xff]
    %v60 = vld [vmem:[#allocation5 + $0x58] sm:$0xff]
    %v61 = vld [vmem:[#allocation5 + $0x60] sm:$0xff]
    %v62 = vld [vmem:[#allocation5 + $0x68] sm:$0xff]
    %v63 = vld [vmem:[#allocation5 + $0x70] sm:$0xff]
    %v64 = vld [vmem:[#allocation5 + $0x78] sm:$0xff]
    %v65 = vld [vmem:[#allocation5 + $0x80] sm:$0xff]
    %v66 = vld [vmem:[#allocation5 + $0x88] sm:$0xff]
    %v67 = vld [vmem:[#allocation5 + $0x90] sm:$0xff]
    %v68 = vld [vmem:[#allocation5 + $0x98] sm:$0xff]
    %v69 = vlaneseq
    %v70 = vshrl.u32 %v69, 7
    %v71 = vsub.s32 0, %v70
    %v72 = vrot.slane %v48, %v71
    %vm73 = vcmask 261120
    %v75 = vsel %vm73, %v41, 0
    %v78 = vsel %vm73, %v43, 0
    %v81 = vsel %vm73, %v45, 0
    %v84 = vsel %vm73, %v47, 0
    %86 = vmatprep.subr.mxu0 0.0
    %87 = vmatpush1.msra.mxu0 %v64
    %88 = vmatprep.subr.mxu0 0.0
    %89 = vmatpush1.msra.mxu0 %v63
    %90 = vmatprep.subr.mxu0 0.0
    %91 = vmatpush1.msra.mxu0 %v62
    %92 = vmatprep.subr.mxu0 0.0
    %93 = vmatpush1.msra.mxu0 %v61
    %94 = vmatprep.subr.mxu0 0.0
    %95 = vmatpush1.msra.mxu0 %v60
    %96 = vmatprep.subr.mxu0 0.0
    %97 = vmatpush1.msra.mxu0 %v59
    %98 = vmatprep.subr.mxu0 0.0
    %99 = vmatpush1.msra.mxu0 %v58
    %100 = vmatprep.subr.mxu0 0.0
    %101 = vmatpush1.msra.mxu0 %v57
    %102 = vmatprep.subr.mxu0 0.0
    %103 = vmatpush1.msra.mxu0 %v56
    %104 = vmatprep.subr.mxu0 0.0
    %105 = vmatpush1.msra.mxu0 %v55
    %106 = vmatprep.subr.mxu0 0.0
    %107 = vmatpush1.msra.mxu0 %v54
    %108 = vmatprep.subr.mxu0 0.0
    %109 = vmatpush1.msra.mxu0 %v53
    %110 = vmatprep.subr.mxu0 0.0
    %111 = vmatpush1.msra.mxu0 %v52
    %112 = vmatprep.subr.mxu0 0.0
    %113 = vmatpush1.msra.mxu0 %v51
    %114 = vmatprep.subr.mxu0 0.0
    %115 = vmatpush1.msra.mxu0 %v50
    %116 = vmatprep.subr.mxu0 0.0
    %117 = vmatpush1.msra.mxu0 %v49
    %118 = vmatprep.subr.mxu0 0.0
    %119 = vmatpush2.msra.mxu0 0.0
    %120 = vmatprep.subr.mxu0 0.0
    %121 = vmatpush2.msra.mxu0 0.0
    %122 = vmatprep.subr.mxu0 0.0
    %123 = vmatpush2.msra.mxu0 0.0
    %124 = vmatprep.subr.mxu0 0.0
    %125 = vmatpush2.msra.mxu0 0.0
    %126 = vmatprep.subr.mxu0 0.0
    %127 = vmatpush2.msra.mxu0 0.0
    %128 = vmatprep.subr.mxu0 0.0
    %129 = vmatpush2.msra.mxu0 0.0
    %130 = vmatprep.subr.mxu0 0.0
    %131 = vmatpush2.msra.mxu0 0.0
    %132 = vmatprep.subr.mxu0 0.0
    %133 = vmatpush2.msra.mxu0 0.0
    %134 = vmatprep.subr.mxu0 0.0
    %135 = vmatpush2.msra.mxu0 0.0
    %136 = vmatprep.subr.mxu0 0.0
    %137 = vmatpush2.msra.mxu0 0.0
    %138 = vmatprep.subr.mxu0 0.0
    %139 = vmatpush2.msra.mxu0 0.0
    %140 = vmatprep.subr.mxu0 0.0
    %141 = vmatpush2.msra.mxu0 0.0
    %142 = vmatprep.subr.mxu0 0.0
    %143 = vmatpush2.msra.mxu0 %v68
    %144 = vmatprep.subr.mxu0 0.0
    %145 = vmatpush2.msra.mxu0 %v67
    %146 = vmatprep.subr.mxu0 0.0
    %147 = vmatpush2.msra.mxu0 %v66
    %148 = vmatprep.subr.mxu0 0.0
    %149 = vmatpush2.msra.mxu0 %v65
    %150 = vmatprep.mubr.f32.mxu0 %v75
    %151 = vmatmul.mubr.f32.gmra.mxu0 %v40
    %v152 = vpop.f32.mrf.mxu0
    %v153 = vadd.f32 %v72, %v152
    %v154 = vpop.f32.mrf.mxu0
    %155 = vmatprep.mubr.f32.mxu0 %v78
    %156 = vmatmul.mubr.f32.gmra.mxu0 %v42
    %v157 = vpop.f32.mrf.mxu0
    %v158 = vadd.f32 %v72, %v157
    %v159 = vpop.f32.mrf.mxu0
    %160 = vmatprep.mubr.f32.mxu0 %v81
    %161 = vmatmul.mubr.f32.gmra.mxu0 %v44
    %v162 = vpop.f32.mrf.mxu0
    %v163 = vadd.f32 %v72, %v162
    %v164 = vpop.f32.mrf.mxu0
    %165 = vmatprep.mubr.f32.mxu0 %v84
    %166 = vmatmul.mubr.f32.gmra.mxu0 %v46
    %v167 = vpop.f32.mrf.mxu0
    %v168 = vadd.f32 %v72, %v167
    %v169 = vpop.f32.mrf.mxu0
    %170 = vdwg.mxu0
    %175 = vrot.lane.b32.xlu0 %v153, 96
    %v176 = vpop.permute.xlu0 %175
    %177 = vrot.lane.b32.xlu0 %v158, 96
    %v178 = vpop.permute.xlu0 %177
    %179 = vrot.lane.b32.xlu0 %v163, 96
    %v180 = vpop.permute.xlu0 %179
    %181 = vrot.lane.b32.xlu0 %v168, 96
    %v182 = vpop.permute.xlu0 %181
    %v187 = vmul.f32 %v153, %v176
    %v188 = vmul.f32 %v158, %v178
    %v189 = vmul.f32 %v163, %v180
    %v190 = vmul.f32 %v168, %v182
    %v191 = vld [vmem:[#allocation5 + $0xa0] sm:$0xff]
    %v192 = vld [vmem:[#allocation5 + $0xa8] sm:$0xff]
    %v193 = vld [vmem:[#allocation5 + $0xb0] sm:$0xff]
    %v194 = vld [vmem:[#allocation5 + $0xb8] sm:$0xff]
    %v195 = vlaneseq
    %v196 = vshrl.u32 %v195, 7
    %v197 = vsub.s32 1, %v196
    %v198 = vrot.slane %v48, %v197
    %v200 = vsel %vm73, %v187, 0
    %v203 = vsel %vm73, %v188, 0
    %v206 = vsel %vm73, %v189, 0
    %v209 = vsel %vm73, %v190, 0
    %211 = vmatprep.subr.mxu0 0.0
    %212 = vmatpush1.msra.mxu0 0.0
    %213 = vmatprep.subr.mxu0 0.0
    %214 = vmatpush1.msra.mxu0 0.0
    %215 = vmatprep.subr.mxu0 0.0
    %216 = vmatpush1.msra.mxu0 0.0
    %217 = vmatprep.subr.mxu0 0.0
    %218 = vmatpush1.msra.mxu0 0.0
    %219 = vmatprep.subr.mxu0 0.0
    %220 = vmatpush1.msra.mxu0 0.0
    %221 = vmatprep.subr.mxu0 0.0
    %222 = vmatpush1.msra.mxu0 0.0
    %223 = vmatprep.subr.mxu0 0.0
    %224 = vmatpush1.msra.mxu0 0.0
    %225 = vmatprep.subr.mxu0 0.0
    %226 = vmatpush1.msra.mxu0 0.0
    %227 = vmatprep.subr.mxu0 0.0
    %228 = vmatpush1.msra.mxu0 0.0
    %229 = vmatprep.subr.mxu0 0.0
    %230 = vmatpush1.msra.mxu0 0.0
    %231 = vmatprep.subr.mxu0 0.0
    %232 = vmatpush1.msra.mxu0 0.0
    %233 = vmatprep.subr.mxu0 0.0
    %234 = vmatpush1.msra.mxu0 0.0
    %235 = vmatprep.subr.mxu0 0.0
    %236 = vmatpush1.msra.mxu0 %v194
    %237 = vmatprep.subr.mxu0 0.0
    %238 = vmatpush1.msra.mxu0 %v193
    %239 = vmatprep.subr.mxu0 0.0
    %240 = vmatpush1.msra.mxu0 %v192
    %241 = vmatprep.subr.mxu0 0.0
    %242 = vmatpush1.msra.mxu0 %v191
    %243 = vmatprep.subr.mxu0 0.0
    %244 = vmatpush2.msra.mxu0 0.0
    %245 = vmatprep.subr.mxu0 0.0
    %246 = vmatpush2.msra.mxu0 0.0
    %247 = vmatprep.subr.mxu0 0.0
    %248 = vmatpush2.msra.mxu0 0.0
    %249 = vmatprep.subr.mxu0 0.0
    %250 = vmatpush2.msra.mxu0 0.0
    %251 = vmatprep.subr.mxu0 0.0
    %252 = vmatpush2.msra.mxu0 0.0
    %253 = vmatprep.subr.mxu0 0.0
    %254 = vmatpush2.msra.mxu0 0.0
    %255 = vmatprep.subr.mxu0 0.0
    %256 = vmatpush2.msra.mxu0 0.0
    %257 = vmatprep.subr.mxu0 0.0
    %258 = vmatpush2.msra.mxu0 0.0
    %259 = vmatprep.subr.mxu0 0.0
    %260 = vmatpush2.msra.mxu0 0.0
    %261 = vmatprep.subr.mxu0 0.0
    %262 = vmatpush2.msra.mxu0 0.0
    %263 = vmatprep.subr.mxu0 0.0
    %264 = vmatpush2.msra.mxu0 0.0
    %265 = vmatprep.subr.mxu0 0.0
    %266 = vmatpush2.msra.mxu0 0.0
    %267 = vmatprep.subr.mxu0 0.0
    %268 = vmatpush2.msra.mxu0 0.0
    %269 = vmatprep.subr.mxu0 0.0
    %270 = vmatpush2.msra.mxu0 0.0
    %271 = vmatprep.subr.mxu0 0.0
    %272 = vmatpush2.msra.mxu0 0.0
    %273 = vmatprep.subr.mxu0 0.0
    %274 = vmatpush2.msra.mxu0 0.0
    %275 = vmatprep.mubr.f32.mxu0 0.0
    %276 = vmatmul.mubr.f32.gmra.mxu0 %v200
    %v277 = vpop.f32.mrf.mxu0
    %v278 = vadd.f32 %v198, %v277
    %v279 = vpop.f32.mrf.mxu0
    %280 = vmatprep.mubr.f32.mxu0 0.0
    %281 = vmatmul.mubr.f32.gmra.mxu0 %v203
    %v282 = vpop.f32.mrf.mxu0
    %v283 = vadd.f32 %v198, %v282
    %v284 = vpop.f32.mrf.mxu0
    %285 = vmatprep.mubr.f32.mxu0 0.0
    %286 = vmatmul.mubr.f32.gmra.mxu0 %v206
    %v287 = vpop.f32.mrf.mxu0
    %v288 = vadd.f32 %v198, %v287
    %v289 = vpop.f32.mrf.mxu0
    %290 = vmatprep.mubr.f32.mxu0 0.0
    %291 = vmatmul.mubr.f32.gmra.mxu0 %v209
    %v292 = vpop.f32.mrf.mxu0
    %v293 = vadd.f32 %v198, %v292
    %v294 = vpop.f32.mrf.mxu0
    %295 = vdwg.mxu0
    %v296 = vadd.f32 %v278, %v40
    %v297 = vadd.f32 %v283, %v42
    %v298 = vadd.f32 %v288, %v44
    %v299 = vadd.f32 %v293, %v46
    %v300 = vsel %vm73, %v296, 0.0
    %301 = vadd.xlane.f32.xlu0 %v300
    %v302 = vpop.xlane.xlu0 %301
    %v303 = vsel %vm73, %v297, 0.0
    %304 = vadd.xlane.f32.xlu0 %v303
    %v305 = vpop.xlane.xlu0 %304
    %v306 = vsel %vm73, %v298, 0.0
    %307 = vadd.xlane.f32.xlu0 %v306
    %v308 = vpop.xlane.xlu0 %307
    %v309 = vsel %vm73, %v299, 0.0
    %310 = vadd.xlane.f32.xlu0 %v309
    %v311 = vpop.xlane.xlu0 %310
    %v312 = vrcp.pop 32.0
    %v313 = vmul.f32 %v302, %v312
    %v314 = vmul.f32 %v305, %v312
    %v315 = vmul.f32 %v308, %v312
    %v316 = vmul.f32 %v311, %v312
    %v317 = vsub.f32 %v296, %v313
    %v318 = vsub.f32 %v297, %v314
    %v319 = vsub.f32 %v298, %v315
    %v320 = vsub.f32 %v299, %v316
    %v321 = vmul.f32 %v317, %v317
    %v322 = vmul.f32 %v318, %v318
    %v323 = vmul.f32 %v319, %v319
    %v324 = vmul.f32 %v320, %v320
    %v325 = vsel %vm73, %v321, 0.0
    %326 = vadd.xlane.f32.xlu0 %v325
    %v327 = vpop.xlane.xlu0 %326
    %v328 = vsel %vm73, %v322, 0.0
    %329 = vadd.xlane.f32.xlu0 %v328
    %v330 = vpop.xlane.xlu0 %329
    %v331 = vsel %vm73, %v323, 0.0
    %332 = vadd.xlane.f32.xlu0 %v331
    %v333 = vpop.xlane.xlu0 %332
    %v334 = vsel %vm73, %v324, 0.0
    %335 = vadd.xlane.f32.xlu0 %v334
    %v336 = vpop.xlane.xlu0 %335
    %v337 = vmul.f32 %v327, %v312
    %v338 = vmul.f32 %v330, %v312
    %v339 = vmul.f32 %v333, %v312
    %v340 = vmul.f32 %v336, %v312
    %v341 = vadd.f32 %v337, 1e-12
    %v342 = vadd.f32 %v338, 1e-12
    %v343 = vadd.f32 %v339, 1e-12
    %v344 = vadd.f32 %v340, 1e-12
    %v345 = vrsqrt.pop %v341
    %v346 = vrsqrt.pop %v342
    %v347 = vrsqrt.pop %v343
    %v348 = vrsqrt.pop %v344
    %v349 = vmul.f32 %v317, %v345
    %v350 = vmul.f32 %v318, %v346
    %v351 = vmul.f32 %v319, %v347
    %v352 = vmul.f32 %v320, %v348
    %v353 = vlaneseq
    %v354 = vshrl.u32 %v353, 7
    %v355 = vsub.s32 2, %v354
    %v356 = vrot.slane %v48, %v355
    %v357 = vmul.f32 %v349, %v356
    %v358 = vmul.f32 %v350, %v356
    %v359 = vmul.f32 %v351, %v356
    %v360 = vmul.f32 %v352, %v356
    %v361 = vlaneseq
    %v362 = vshrl.u32 %v361, 7
    %v363 = vsub.s32 3, %v362
    %v364 = vrot.slane %v48, %v363
    %v365 = vadd.f32 %v357, %v364
    %v366 = vadd.f32 %v358, %v364
    %v367 = vadd.f32 %v359, %v364
    %v368 = vadd.f32 %v360, %v364
    %v369 = vld [vmem:[#allocation5 + $0xc0] sm:$0xff]
    %v370 = vld [vmem:[#allocation5 + $0xc8] sm:$0xff]
    %v371 = vld [vmem:[#allocation5 + $0xd0] sm:$0xff]
    %v372 = vld [vmem:[#allocation5 + $0xd8] sm:$0xff]
    %v373 = vlaneseq
    %v374 = vshrl.u32 %v373, 7
    %v375 = vsub.s32 4, %v374
    %v376 = vrot.slane %v48, %v375
    %v378 = vsel %vm73, %v365, 0
    %v381 = vsel %vm73, %v366, 0
    %v384 = vsel %vm73, %v367, 0
    %v387 = vsel %vm73, %v368, 0
    %389 = vmatprep.subr.mxu0 0.0
    %390 = vmatpush1.msra.mxu0 0.0
    %391 = vmatprep.subr.mxu0 0.0
    %392 = vmatpush1.msra.mxu0 0.0
    %393 = vmatprep.subr.mxu0 0.0
    %394 = vmatpush1.msra.mxu0 0.0
    %395 = vmatprep.subr.mxu0 0.0
    %396 = vmatpush1.msra.mxu0 0.0
    %397 = vmatprep.subr.mxu0 0.0
    %398 = vmatpush1.msra.mxu0 0.0
    %399 = vmatprep.subr.mxu0 0.0
    %400 = vmatpush1.msra.mxu0 0.0
    %401 = vmatprep.subr.mxu0 0.0
    %402 = vmatpush1.msra.mxu0 0.0
    %403 = vmatprep.subr.mxu0 0.0
    %404 = vmatpush1.msra.mxu0 0.0
    %405 = vmatprep.subr.mxu0 0.0
    %406 = vmatpush1.msra.mxu0 0.0
    %407 = vmatprep.subr.mxu0 0.0
    %408 = vmatpush1.msra.mxu0 0.0
    %409 = vmatprep.subr.mxu0 0.0
    %410 = vmatpush1.msra.mxu0 0.0
    %411 = vmatprep.subr.mxu0 0.0
    %412 = vmatpush1.msra.mxu0 0.0
    %413 = vmatprep.subr.mxu0 0.0
    %414 = vmatpush1.msra.mxu0 %v372
    %415 = vmatprep.subr.mxu0 0.0
    %416 = vmatpush1.msra.mxu0 %v371
    %417 = vmatprep.subr.mxu0 0.0
    %418 = vmatpush1.msra.mxu0 %v370
    %419 = vmatprep.subr.mxu0 0.0
    %420 = vmatpush1.msra.mxu0 %v369
    %421 = vmatprep.subr.mxu0 0.0
    %422 = vmatpush2.msra.mxu0 0.0
    %423 = vmatprep.subr.mxu0 0.0
    %424 = vmatpush2.msra.mxu0 0.0
    %425 = vmatprep.subr.mxu0 0.0
    %426 = vmatpush2.msra.mxu0 0.0
    %427 = vmatprep.subr.mxu0 0.0
    %428 = vmatpush2.msra.mxu0 0.0
    %429 = vmatprep.subr.mxu0 0.0
    %430 = vmatpush2.msra.mxu0 0.0
    %431 = vmatprep.subr.mxu0 0.0
    %432 = vmatpush2.msra.mxu0 0.0
    %433 = vmatprep.subr.mxu0 0.0
    %434 = vmatpush2.msra.mxu0 0.0
    %435 = vmatprep.subr.mxu0 0.0
    %436 = vmatpush2.msra.mxu0 0.0
    %437 = vmatprep.subr.mxu0 0.0
    %438 = vmatpush2.msra.mxu0 0.0
    %439 = vmatprep.subr.mxu0 0.0
    %440 = vmatpush2.msra.mxu0 0.0
    %441 = vmatprep.subr.mxu0 0.0
    %442 = vmatpush2.msra.mxu0 0.0
    %443 = vmatprep.subr.mxu0 0.0
    %444 = vmatpush2.msra.mxu0 0.0
    %445 = vmatprep.subr.mxu0 0.0
    %446 = vmatpush2.msra.mxu0 0.0
    %447 = vmatprep.subr.mxu0 0.0
    %448 = vmatpush2.msra.mxu0 0.0
    %449 = vmatprep.subr.mxu0 0.0
    %450 = vmatpush2.msra.mxu0 0.0
    %451 = vmatprep.subr.mxu0 0.0
    %452 = vmatpush2.msra.mxu0 0.0
    %453 = vmatprep.mubr.f32.mxu0 0.0
    %454 = vmatmul.mubr.f32.gmra.mxu0 %v378
    %v455 = vpop.f32.mrf.mxu0
    %v456 = vadd.f32 %v376, %v455
    %v457 = vpop.f32.mrf.mxu0
    %458 = vmatprep.mubr.f32.mxu0 0.0
    %459 = vmatmul.mubr.f32.gmra.mxu0 %v381
    %v460 = vpop.f32.mrf.mxu0
    %v461 = vadd.f32 %v376, %v460
    %v462 = vpop.f32.mrf.mxu0
    %463 = vmatprep.mubr.f32.mxu0 0.0
    %464 = vmatmul.mubr.f32.gmra.mxu0 %v384
    %v465 = vpop.f32.mrf.mxu0
    %v466 = vadd.f32 %v376, %v465
    %v467 = vpop.f32.mrf.mxu0
    %468 = vmatprep.mubr.f32.mxu0 0.0
    %469 = vmatmul.mubr.f32.gmra.mxu0 %v387
    %v470 = vpop.f32.mrf.mxu0
    %v471 = vadd.f32 %v376, %v470
    %v472 = vpop.f32.mrf.mxu0
    %473 = vdwg.mxu0
    %v474 = vmul.f32 %v456, 0.5
    %v475 = vmul.f32 %v461, 0.5
    %v476 = vmul.f32 %v466, 0.5
    %v477 = vmul.f32 %v471, 0.5
    %v478 = vmul.f32 %v456, 0.044715
    %v479 = vmul.f32 %v461, 0.044715
    %v480 = vmul.f32 %v466, 0.044715
    %v481 = vmul.f32 %v471, 0.044715
    %v482 = vmul.f32 %v478, %v456
    %v483 = vmul.f32 %v479, %v461
    %v484 = vmul.f32 %v480, %v466
    %v485 = vmul.f32 %v481, %v471
    %v486 = vmul.f32 %v482, %v456
    %v487 = vmul.f32 %v483, %v461
    %v488 = vmul.f32 %v484, %v466
    %v489 = vmul.f32 %v485, %v471
    %v490 = vadd.f32 %v456, %v486
    %v491 = vadd.f32 %v461, %v487
    %v492 = vadd.f32 %v466, %v488
    %v493 = vadd.f32 %v471, %v489
    %v494 = vmul.f32 %v490, 0.7978846
    %v495 = vmul.f32 %v491, 0.7978846
    %v496 = vmul.f32 %v492, 0.7978846
    %v497 = vmul.f32 %v493, 0.7978846
    %v498 = vtanh.pop %v494
    %v499 = vtanh.pop %v495
    %v500 = vtanh.pop %v496
    %v501 = vtanh.pop %v497
    %v502 = vadd.f32 %v498, 1.0
    %v503 = vadd.f32 %v499, 1.0
    %v504 = vadd.f32 %v500, 1.0
    %v505 = vadd.f32 %v501, 1.0
    %v506 = vmul.f32 %v474, %v502
    %v507 = vmul.f32 %v475, %v503
    %v508 = vmul.f32 %v476, %v504
    %v509 = vmul.f32 %v477, %v505
    %v510 = vld [vmem:[#allocation5 + $0xe0] sm:$0xff]
    %v511 = vld [vmem:[#allocation5 + $0xe8] sm:$0xff]
    %v512 = vld [vmem:[#allocation5 + $0xf0] sm:$0xff]
    %v513 = vld [vmem:[#allocation5 + $0xf8] sm:$0xff]
    %v514 = vld [vmem:[#allocation5 + $0x100] sm:$0xff]
    %v515 = vld [vmem:[#allocation5 + $0x108] sm:$0xff]
    %v516 = vld [vmem:[#allocation5 + $0x110] sm:$0xff]
    %v517 = vld [vmem:[#allocation5 + $0x118] sm:$0xff]
    %v518 = vlaneseq
    %v519 = vshrl.u32 %v518, 7
    %v520 = vsub.s32 5, %v519
    %v521 = vrot.slane %v48, %v520
    %vm522 = vcmask 523264
    %v524 = vsel %vm522, %v506, 0
    %v527 = vsel %vm522, %v507, 0
    %v530 = vsel %vm522, %v508, 0
    %v533 = vsel %vm522, %v509, 0
    %535 = vmatprep.subr.mxu0 0.0
    %536 = vmatpush1.msra.mxu0 0.0
    %537 = vmatprep.subr.mxu0 0.0
    %538 = vmatpush1.msra.mxu0 0.0
    %539 = vmatprep.subr.mxu0 0.0
    %540 = vmatpush1.msra.mxu0 0.0
    %541 = vmatprep.subr.mxu0 0.0
    %542 = vmatpush1.msra.mxu0 0.0
    %543 = vmatprep.subr.mxu0 0.0
    %544 = vmatpush1.msra.mxu0 0.0
    %545 = vmatprep.subr.mxu0 0.0
    %546 = vmatpush1.msra.mxu0 0.0
    %547 = vmatprep.subr.mxu0 0.0
    %548 = vmatpush1.msra.mxu0 0.0
    %549 = vmatprep.subr.mxu0 0.0
    %550 = vmatpush1.msra.mxu0 0.0
    %551 = vmatprep.subr.mxu0 0.0
    %552 = vmatpush1.msra.mxu0 %v517
    %553 = vmatprep.subr.mxu0 0.0
    %554 = vmatpush1.msra.mxu0 %v516
    %555 = vmatprep.subr.mxu0 0.0
    %556 = vmatpush1.msra.mxu0 %v515
    %557 = vmatprep.subr.mxu0 0.0
    %558 = vmatpush1.msra.mxu0 %v514
    %559 = vmatprep.subr.mxu0 0.0
    %560 = vmatpush1.msra.mxu0 %v513
    %561 = vmatprep.subr.mxu0 0.0
    %562 = vmatpush1.msra.mxu0 %v512
    %563 = vmatprep.subr.mxu0 0.0
    %564 = vmatpush1.msra.mxu0 %v511
    %565 = vmatprep.subr.mxu0 0.0
    %566 = vmatpush1.msra.mxu0 %v510
    %567 = vmatprep.subr.mxu0 0.0
    %568 = vmatpush2.msra.mxu0 0.0
    %569 = vmatprep.subr.mxu0 0.0
    %570 = vmatpush2.msra.mxu0 0.0
    %571 = vmatprep.subr.mxu0 0.0
    %572 = vmatpush2.msra.mxu0 0.0
    %573 = vmatprep.subr.mxu0 0.0
    %574 = vmatpush2.msra.mxu0 0.0
    %575 = vmatprep.subr.mxu0 0.0
    %576 = vmatpush2.msra.mxu0 0.0
    %577 = vmatprep.subr.mxu0 0.0
    %578 = vmatpush2.msra.mxu0 0.0
    %579 = vmatprep.subr.mxu0 0.0
    %580 = vmatpush2.msra.mxu0 0.0
    %581 = vmatprep.subr.mxu0 0.0
    %582 = vmatpush2.msra.mxu0 0.0
    %583 = vmatprep.subr.mxu0 0.0
    %584 = vmatpush2.msra.mxu0 0.0
    %585 = vmatprep.subr.mxu0 0.0
    %586 = vmatpush2.msra.mxu0 0.0
    %587 = vmatprep.subr.mxu0 0.0
    %588 = vmatpush2.msra.mxu0 0.0
    %589 = vmatprep.subr.mxu0 0.0
    %590 = vmatpush2.msra.mxu0 0.0
    %591 = vmatprep.subr.mxu0 0.0
    %592 = vmatpush2.msra.mxu0 0.0
    %593 = vmatprep.subr.mxu0 0.0
    %594 = vmatpush2.msra.mxu0 0.0
    %595 = vmatprep.subr.mxu0 0.0
    %596 = vmatpush2.msra.mxu0 0.0
    %597 = vmatprep.subr.mxu0 0.0
    %598 = vmatpush2.msra.mxu0 0.0
    %599 = vmatprep.mubr.f32.mxu0 0.0
    %600 = vmatmul.mubr.f32.gmra.mxu0 %v524
    %v601 = vpop.f32.mrf.mxu0
    %v602 = vadd.f32 %v521, %v601
    %v603 = vpop.f32.mrf.mxu0
    %604 = vmatprep.mubr.f32.mxu0 0.0
    %605 = vmatmul.mubr.f32.gmra.mxu0 %v527
    %v606 = vpop.f32.mrf.mxu0
    %v607 = vadd.f32 %v521, %v606
    %v608 = vpop.f32.mrf.mxu0
    %609 = vmatprep.mubr.f32.mxu0 0.0
    %610 = vmatmul.mubr.f32.gmra.mxu0 %v530
    %v611 = vpop.f32.mrf.mxu0
    %v612 = vadd.f32 %v521, %v611
    %v613 = vpop.f32.mrf.mxu0
    %614 = vmatprep.mubr.f32.mxu0 0.0
    %615 = vmatmul.mubr.f32.gmra.mxu0 %v533
    %v616 = vpop.f32.mrf.mxu0
    %v617 = vadd.f32 %v521, %v616
    %v618 = vpop.f32.mrf.mxu0
    %619 = vdwg.mxu0
    %v620 = vadd.f32 %v602, %v365
    %v621 = vadd.f32 %v607, %v366
    %v622 = vadd.f32 %v612, %v367
    %v623 = vadd.f32 %v617, %v368
    %v624 = vsel %vm73, %v620, 0.0
    %625 = vadd.xlane.f32.xlu0 %v624
    %v626 = vpop.xlane.xlu0 %625
    %v627 = vsel %vm73, %v621, 0.0
    %628 = vadd.xlane.f32.xlu0 %v627
    %v629 = vpop.xlane.xlu0 %628
    %v630 = vsel %vm73, %v622, 0.0
    %631 = vadd.xlane.f32.xlu0 %v630
    %v632 = vpop.xlane.xlu0 %631
    %v633 = vsel %vm73, %v623, 0.0
    %634 = vadd.xlane.f32.xlu0 %v633
    %v635 = vpop.xlane.xlu0 %634
    %v636 = vmul.f32 %v626, %v312
    %v637 = vmul.f32 %v629, %v312
    %v638 = vmul.f32 %v632, %v312
    %v639 = vmul.f32 %v635, %v312
    %v640 = vsub.f32 %v620, %v636
    %v641 = vsub.f32 %v621, %v637
    %v642 = vsub.f32 %v622, %v638
    %v643 = vsub.f32 %v623, %v639
    %v644 = vmul.f32 %v640, %v640
    %v645 = vmul.f32 %v641, %v641
    %v646 = vmul.f32 %v642, %v642
    %v647 = vmul.f32 %v643, %v643
    %v648 = vsel %vm73, %v644, 0.0
    %649 = vadd.xlane.f32.xlu0 %v648
    %v650 = vpop.xlane.xlu0 %649
    %v651 = vsel %vm73, %v645, 0.0
    %652 = vadd.xlane.f32.xlu0 %v651
    %v653 = vpop.xlane.xlu0 %652
    %v654 = vsel %vm73, %v646, 0.0
    %655 = vadd.xlane.f32.xlu0 %v654
    %v656 = vpop.xlane.xlu0 %655
    %v657 = vsel %vm73, %v647, 0.0
    %658 = vadd.xlane.f32.xlu0 %v657
    %v659 = vpop.xlane.xlu0 %658
    %v660 = vmul.f32 %v650, %v312
    %v661 = vmul.f32 %v653, %v312
    %v662 = vmul.f32 %v656, %v312
    %v663 = vmul.f32 %v659, %v312
    %v664 = vadd.f32 %v660, 1e-12
    %v665 = vadd.f32 %v661, 1e-12
    %v666 = vadd.f32 %v662, 1e-12
    %v667 = vadd.f32 %v663, 1e-12
    %v668 = vrsqrt.pop %v664
    %v669 = vrsqrt.pop %v665
    %v670 = vrsqrt.pop %v666
    %v671 = vrsqrt.pop %v667
    %v672 = vmul.f32 %v640, %v668
    %v673 = vmul.f32 %v641, %v669
    %v674 = vmul.f32 %v642, %v670
    %v675 = vmul.f32 %v643, %v671
    %v676 = vlaneseq
    %v677 = vshrl.u32 %v676, 7
    %v678 = vsub.s32 6, %v677
    %v679 = vrot.slane %v48, %v678
    %v680 = vmul.f32 %v672, %v679
    %v681 = vmul.f32 %v673, %v679
    %v682 = vmul.f32 %v674, %v679
    %v683 = vmul.f32 %v675, %v679
    %v684 = vlaneseq
    %v685 = vshrl.u32 %v684, 7
    %v686 = vsub.s32 7, %v685
    %v687 = vrot.slane %v48, %v686
    %v688 = vadd.f32 %v680, %v687
    %v689 = vadd.f32 %v681, %v687
    %v690 = vadd.f32 %v682, %v687
    %v691 = vadd.f32 %v683, %v687
    %692 = vst.msk [vmem:[#allocation7] sm:$0xff] %vm73, %v688
    %693 = vst.msk [vmem:[#allocation7 + $0x8] sm:$0xff] %vm73, %v689
    %694 = vst.msk [vmem:[#allocation7 + $0x10] sm:$0xff] %vm73, %v690
    %695 = vst.msk [vmem:[#allocation7 + $0x18] sm:$0xff] %vm73, %v691
    // Predicated region
    $region18: #{tpu_custom_call.1} parent=1 // pred_check
      _
    $region19: #{tpu_custom_call.1} parent=1 // pred_check_branch
      %697 = sbr.rel (0) target = $region21
    $region20: #{tpu_custom_call.1} parent=1 // pred_region
      %s699 = ssub.s32 512, 512
      %700 = vsyncadd [#allocation4], %s699
      %s701 = sshll.u32 [#allocation7], 4
      %s702 = int_to_ptr.vmem [resolvable:$true] %s701
      %707 = dma.vmem_to_hbm [thread:$0]  %s702, 512, %s2, [#allocation4], 128, 128, 8
    $region21: #{tpu_custom_call.1} parent=1 // pred_fallthru
      _
    // Predicated region
    $region22: #{tpu_custom_call.1} parent=1 // pred_check
      _
    $region23: #{tpu_custom_call.1} parent=1 // pred_check_branch
      %709 = sbr.rel (0) target = $region25
    $region24: #{tpu_custom_call.1} parent=1 // pred_region
      %710 = dma.done [#allocation4], 512
    $region25: #{tpu_custom_call.1} parent=1 // pred_fallthru
      _
    %711 = vsyncpa [#allocation3], 1
    %712 = vsyncpa [#allocation6], 1
    %713 = vsyncpa [#allocation4], 1

</llo_original>
